<compile_context>
chip_gen: v7x
topology: tpu7x:2x2x1
jax: 0.10.0
libtpu: 0.0.40
codegen_flags: <defaults>
</compile_context>

<pallas_src>
import jax
import jax.numpy as jnp
import numpy as np
from jax.experimental import pallas as pl
from jax.experimental.pallas import tpu as pltpu  # noqa: F401  (TPU backend)

# small, module-consistent shapes
NUM_EMBEDDINGS = 8                       # E  (sequence positions / conv length)
LEN_EMBEDDING = 128                      # D  (embedding dim, lane-dense)
NUM_HEADS = 4                            # H
LEN_HEAD = LEN_EMBEDDING // NUM_HEADS    # Lh

# The closed-form realization of the module's reshape scrambles below assumes:
assert LEN_EMBEDDING % NUM_HEADS == 0
assert NUM_EMBEDDINGS % NUM_HEADS == 0
assert LEN_HEAD % NUM_EMBEDDINGS == 0


# ------------------------- fused single-shot kernel -------------------------
def _mha_fused_kernel(x_ref, wkqv_ref, bkqv_ref, bias_ref, wz_ref, bz_ref, o_ref):
    E, D, H, Lh = NUM_EMBEDDINGS, LEN_EMBEDDING, NUM_HEADS, LEN_HEAD
    HE = H * E                 # rows of the stacked per-head score / Z matrices (32)
    n_q = Lh // E              # lane groups in the Q/V scramble (4)
    n_k = D // Lh              # lane groups in the K scramble   (== H)

    # ---- fused K/Q/V projection: one lane-dense (E,D) @ (D,3D) matmul ----
    x = x_ref[...].astype(jnp.bfloat16)                                  # (E, D)
    proj = jnp.dot(x, wkqv_ref[...],
                   preferred_element_type=jnp.float32) + bkqv_ref[...]   # (E, 3D) f32

    kt = proj[:, 0:D]              # (E, D)  = x @ Wk^T + bk
    qb = proj[:, D:2 * D]          # (E, D)  = qt[:, perm_q]  (host-permuted columns)
    vb = proj[:, 2 * D:3 * D]      # (E, D)  = vt[:, perm_v]  (host-permuted columns)

    # ---- realize the module's head scrambles with slices / concats only ----
    # k_heads[c, l] = K[head(c), j(c), l]   (k/v rows share the order rho(c))
    k_heads = jnp.concatenate(
        [kt[:, g * Lh:(g + 1) * Lh] for g in range(n_k)], axis=0)        # (HE, Lh)
    # v_t[l, c] = V[head(c), j(c), l]       (already transposed -> no XLU op)
    v_t = jnp.concatenate(
        [vb[:, a * HE:(a + 1) * HE] for a in range(n_q)], axis=0)        # (Lh, HE)
    # Q needs one (8,128)->(128,8) transpose; its lane groups are consumed
    # piecewise by the score matmuls below (no cross-lane concatenation).
    qbt = qb.T                                                           # (D, E)

    # ---- scores for all heads: scores[q, c] = sum_l Q_all[q, l] * k_heads[c, l]
    scores = jnp.zeros((HE, HE), jnp.float32)
    for a in range(n_q):
        q_piece = qbt[a * HE:(a + 1) * HE, :]                            # (HE, E)
        k_piece = k_heads[:, a * E:(a + 1) * E]                          # (HE, E)
        scores = scores + jax.lax.dot_general(
            q_piece, k_piece, (((1,), (1,)), ((), ())),
            preferred_element_type=jnp.float32)

    # module scales by 1/len_head (not rsqrt); additive mask blocks cross-head pairs
    scores = scores * (1.0 / Lh) + bias_ref[...]
    scores = scores - jnp.max(scores, axis=-1, keepdims=True)
    probs = jnp.exp(scores)
    probs = probs / jnp.sum(probs, axis=-1, keepdims=True)               # exact softmax

    # ---- Z[q, l] = sum_c probs[q, c] * v_t[l, c] ----
    z = jax.lax.dot_general(probs, v_t, (((1,), (1,)), ((), ())),
                            preferred_element_type=jnp.float32)          # (HE, Lh)

    # ---- head merge folded into WZ: out = sum_h Z_h @ (Wz^T)_h + bz ----
    wz = wz_ref[...]                                                     # (D, D) bf16 = Wz^T
    acc = jnp.zeros((E, D), jnp.float32)
    for h in range(H):
        acc = acc + jnp.dot(z[h * E:(h + 1) * E, :].astype(jnp.bfloat16),
                            wz[h * Lh:(h + 1) * Lh, :],
                            preferred_element_type=jnp.float32)
    o_ref[...] = acc + bz_ref[...]                                       # (E, D) f32, lane-dense


# ------------------------------- forward pass -------------------------------
def mha_forward(inp, prep):
    """inp: (1, E, D) float32 -> (1, E, D) float32 (batch must be 1)."""
    E, D = NUM_EMBEDDINGS, LEN_EMBEDDING
    assert inp.ndim == 3 and inp.shape[0] == 1, "MHA forward only supports batch == 1"
    assert inp.shape[1] == E and inp.shape[2] == D
    x = inp[0]

    out = pl.pallas_call(
        _mha_fused_kernel,
        out_shape=jax.ShapeDtypeStruct((E, D), jnp.float32),
    )(x, prep["w_kqv"], prep["b_kqv"], prep["attn_bias"], prep["wz_t"], prep["bz"])

    return out[None]


# ------------------------- pure-JAX f32 reference -------------------------
def mha_reference(inp, params):
    E, D, H, Lh = NUM_EMBEDDINGS, LEN_EMBEDDING, NUM_HEADS, LEN_HEAD
    x = inp[0]
    kt = x @ params["wk_w"].T + params["wk_b"]
    qt = x @ params["wq_w"].T + params["wq_b"]
    vt = x @ params["wv_w"].T + params["wv_b"]
    k = kt.reshape(H, E, Lh)
    q = qt.T.reshape(H, E, Lh)
    v = vt.T.reshape(H, E, Lh)
    s = jnp.einsum("hqd,hkd->hqk", q, k) / Lh
    p = jax.nn.softmax(s, axis=-1)
    z = jnp.einsum("hqk,hkd->hqd", p, v)
    zt = jnp.swapaxes(z, 0, 1).reshape(E, D)
    return (zt @ params["wz_w"].T + params["wz_b"])[None]


# -------------------- deterministic parameter init / prep --------------------
def init_params(key):
    D = LEN_EMBEDDING
    keys = jax.random.split(key, 8)

    def w(k, shape, fan_in):
        return (jax.random.normal(k, shape, jnp.float32) / np.sqrt(fan_in)).astype(jnp.float32)

    # Conv1d(kernel=1) weights stored as (out, in); biases (out,)
    return {
        "wk_w": w(keys[0], (D, D), D), "wk_b": w(keys[1], (D,), D),
        "wq_w": w(keys[2], (D, D), D), "wq_b": w(keys[3], (D,), D),
        "wv_w": w(keys[4], (D, D), D), "wv_b": w(keys[5], (D,), D),
        "wz_w": w(keys[6], (D, D), D), "wz_b": w(keys[7], (D,), D),
    }


def prepare_params(p):
    E, D, H, Lh = NUM_EMBEDDINGS, LEN_EMBEDDING, NUM_HEADS, LEN_HEAD
    HE = H * E
    n_q = Lh // E              # q/v lane groups
    n_k = D // Lh              # k lane groups (== H)
    r = E // H                 # rows of kt per head

    # Column permutations that make the module's reshape scrambles fall out of
    # contiguous slices of the projection output (derivation in the kernel):
    #   Q: proj q-column (a*HE + i)        must be qt column  n_q*i + a
    #   V: proj v-column (a*HE + g*E + e)  must be vt column (e//r)*Lh + (n_k*(e%r)+g)*n_q + a
    perm_q = np.empty(D, dtype=np.int32)
    for a in range(n_q):
        for i in range(HE):
            perm_q[a * HE + i] = n_q * i + a
    perm_v = np.empty(D, dtype=np.int32)
    for a in range(n_q):
        for g in range(n_k):
            for e in range(E):
                perm_v[a * HE + g * E + e] = (e // r) * Lh + (n_k * (e % r) + g) * n_q + a
    assert sorted(perm_q.tolist()) == list(range(D))
    assert sorted(perm_v.tolist()) == list(range(D))

    wk, wq, wv, wzw = p["wk_w"], p["wq_w"], p["wv_w"], p["wz_w"]
    bk, bq, bv, bzb = p["wk_b"], p["wq_b"], p["wv_b"], p["wz_b"]

    w_kqv = jnp.concatenate([wk.T, wq[perm_q].T, wv[perm_v].T], axis=1)   # (D, 3D)
    b_kqv = jnp.concatenate([bk, bq[perm_q], bv[perm_v]]).reshape(1, 3 * D)

    # additive mask: query row qr attends only to k/v rows c of its own head
    qr = np.arange(HE)[:, None]
    c = np.arange(HE)[None, :]
    allowed = (qr // E) == ((c % E) // r)
    attn_bias = np.where(allowed, 0.0, -1e30).astype(np.float32)          # (HE, HE)

    return {
        "w_kqv": w_kqv.astype(jnp.bfloat16),
        "b_kqv": b_kqv.astype(jnp.float32),
        "attn_bias": jnp.asarray(attn_bias),
        "wz_t": jnp.asarray(wzw.T, jnp.bfloat16),
        "bz": bzb.reshape(1, D).astype(jnp.float32),
    }


if __name__ == "__main__":
    key = jax.random.PRNGKey(0)
    pkey, xkey = jax.random.split(key)
    params = init_params(pkey)
    prep = prepare_params(params)

    # input matches the PyTorch shape (batch=1, num_embeddings, len_embedding)
    x = jax.random.normal(xkey, (1, NUM_EMBEDDINGS, LEN_EMBEDDING), jnp.float32)

    fwd = jax.jit(mha_forward)
    out = jax.block_until_ready(fwd(x, prep))

    ref = mha_reference(x, params)
    # bf16 MXU weights (f32 accumulation) -> slightly relaxed tolerance
    np.testing.assert_allclose(np.asarray(out), np.asarray(ref), rtol=3e-2, atol=3e-2)
    assert out.shape == (1, NUM_EMBEDDINGS, LEN_EMBEDDING)
    print("KERNEL_OK")
</pallas_src>

<mosaic_0001>
module attributes {stable_mosaic.version = 11 : i64} {
  func.func @_mha_fused_kernel(%arg0: memref<8x128xf32, #tpu.memory_space<vmem>>, %arg1: memref<128x384xbf16, #tpu.memory_space<vmem>>, %arg2: memref<1x384xf32, #tpu.memory_space<vmem>>, %arg3: memref<32x32xf32, #tpu.memory_space<vmem>>, %arg4: memref<128x128xbf16, #tpu.memory_space<vmem>>, %arg5: memref<1x128xf32, #tpu.memory_space<vmem>>, %arg6: memref<8x128xf32, #tpu.memory_space<vmem>>) attributes {dimension_semantics = [], scalar_prefetch = 0 : i64, scratch_operands = 0 : i64, tpu.core_type = #tpu.core_type<tc>} {
    %c0 = arith.constant 0 : index
    %c0_0 = arith.constant 0 : index
    %0 = vector.load %arg0[%c0, %c0_0] : memref<8x128xf32, #tpu.memory_space<vmem>>, vector<8x128xf32>
    %1 = arith.truncf %0 : vector<8x128xf32> to vector<8x128xbf16>
    %c0_1 = arith.constant 0 : index
    %c0_2 = arith.constant 0 : index
    %2 = vector.load %arg1[%c0_1, %c0_2] : memref<128x384xbf16, #tpu.memory_space<vmem>>, vector<128x384xbf16>
    %cst = arith.constant dense<0.000000e+00> : vector<8x384xf32>
    %3 = tpu.matmul %1, %2, %cst {dimension_numbers = #tpu.dot_dimension_numbers<[1], [0], [0], [1], [0, 0, 1, 1], [], []>} : vector<8x128xbf16>, vector<128x384xbf16>, vector<8x384xf32> -> vector<8x384xf32>
    %c0_3 = arith.constant 0 : index
    %c0_4 = arith.constant 0 : index
    %4 = vector.load %arg2[%c0_3, %c0_4] : memref<1x384xf32, #tpu.memory_space<vmem>>, vector<1x384xf32>
    %5 = vector.broadcast %4 : vector<1x384xf32> to vector<8x384xf32>
    %6 = arith.addf %3, %5 : vector<8x384xf32>
    %7 = vector.extract_strided_slice %6 {offsets = [0, 0], sizes = [8, 128], strides = [1, 1]} : vector<8x384xf32> to vector<8x128xf32>
    %8 = vector.extract_strided_slice %6 {offsets = [0, 128], sizes = [8, 128], strides = [1, 1]} : vector<8x384xf32> to vector<8x128xf32>
    %9 = vector.extract_strided_slice %6 {offsets = [0, 256], sizes = [8, 128], strides = [1, 1]} : vector<8x384xf32> to vector<8x128xf32>
    %10 = vector.extract_strided_slice %7 {offsets = [0, 0], sizes = [8, 32], strides = [1, 1]} : vector<8x128xf32> to vector<8x32xf32>
    %11 = vector.extract_strided_slice %7 {offsets = [0, 32], sizes = [8, 32], strides = [1, 1]} : vector<8x128xf32> to vector<8x32xf32>
    %12 = vector.extract_strided_slice %7 {offsets = [0, 64], sizes = [8, 32], strides = [1, 1]} : vector<8x128xf32> to vector<8x32xf32>
    %13 = vector.extract_strided_slice %7 {offsets = [0, 96], sizes = [8, 32], strides = [1, 1]} : vector<8x128xf32> to vector<8x32xf32>
    %14 = tpu.concatenate %10, %11, %12, %13 in 0 : vector<8x32xf32>, vector<8x32xf32>, vector<8x32xf32>, vector<8x32xf32> -> vector<32x32xf32>
    %15 = vector.extract_strided_slice %9 {offsets = [0, 0], sizes = [8, 32], strides = [1, 1]} : vector<8x128xf32> to vector<8x32xf32>
    %16 = vector.extract_strided_slice %9 {offsets = [0, 32], sizes = [8, 32], strides = [1, 1]} : vector<8x128xf32> to vector<8x32xf32>
    %17 = vector.extract_strided_slice %9 {offsets = [0, 64], sizes = [8, 32], strides = [1, 1]} : vector<8x128xf32> to vector<8x32xf32>
    %18 = vector.extract_strided_slice %9 {offsets = [0, 96], sizes = [8, 32], strides = [1, 1]} : vector<8x128xf32> to vector<8x32xf32>
    %19 = tpu.concatenate %15, %16, %17, %18 in 0 : vector<8x32xf32>, vector<8x32xf32>, vector<8x32xf32>, vector<8x32xf32> -> vector<32x32xf32>
    %20 = tpu.transpose %8, [1, 0] : vector<8x128xf32> -> vector<128x8xf32>
    %cst_5 = arith.constant 0.000000e+00 : f32
    %21 = vector.broadcast %cst_5 : f32 to vector<32x32xf32>
    %22 = vector.extract_strided_slice %20 {offsets = [0, 0], sizes = [32, 8], strides = [1, 1]} : vector<128x8xf32> to vector<32x8xf32>
    %23 = vector.extract_strided_slice %14 {offsets = [0, 0], sizes = [32, 8], strides = [1, 1]} : vector<32x32xf32> to vector<32x8xf32>
    %cst_6 = arith.constant dense<0.000000e+00> : vector<32x32xf32>
    %24 = tpu.matmul %22, %23, %cst_6 {dimension_numbers = #tpu.dot_dimension_numbers<[1], [1], [0], [0], [0, 0, 1, 0], [], []>} : vector<32x8xf32>, vector<32x8xf32>, vector<32x32xf32> -> vector<32x32xf32>
    %25 = arith.addf %21, %24 : vector<32x32xf32>
    %26 = vector.extract_strided_slice %20 {offsets = [32, 0], sizes = [32, 8], strides = [1, 1]} : vector<128x8xf32> to vector<32x8xf32>
    %27 = vector.extract_strided_slice %14 {offsets = [0, 8], sizes = [32, 8], strides = [1, 1]} : vector<32x32xf32> to vector<32x8xf32>
    %cst_7 = arith.constant dense<0.000000e+00> : vector<32x32xf32>
    %28 = tpu.matmul %26, %27, %cst_7 {dimension_numbers = #tpu.dot_dimension_numbers<[1], [1], [0], [0], [0, 0, 1, 0], [], []>} : vector<32x8xf32>, vector<32x8xf32>, vector<32x32xf32> -> vector<32x32xf32>
    %29 = arith.addf %25, %28 : vector<32x32xf32>
    %30 = vector.extract_strided_slice %20 {offsets = [64, 0], sizes = [32, 8], strides = [1, 1]} : vector<128x8xf32> to vector<32x8xf32>
    %31 = vector.extract_strided_slice %14 {offsets = [0, 16], sizes = [32, 8], strides = [1, 1]} : vector<32x32xf32> to vector<32x8xf32>
    %cst_8 = arith.constant dense<0.000000e+00> : vector<32x32xf32>
    %32 = tpu.matmul %30, %31, %cst_8 {dimension_numbers = #tpu.dot_dimension_numbers<[1], [1], [0], [0], [0, 0, 1, 0], [], []>} : vector<32x8xf32>, vector<32x8xf32>, vector<32x32xf32> -> vector<32x32xf32>
    %33 = arith.addf %29, %32 : vector<32x32xf32>
    %34 = vector.extract_strided_slice %20 {offsets = [96, 0], sizes = [32, 8], strides = [1, 1]} : vector<128x8xf32> to vector<32x8xf32>
    %35 = vector.extract_strided_slice %14 {offsets = [0, 24], sizes = [32, 8], strides = [1, 1]} : vector<32x32xf32> to vector<32x8xf32>
    %cst_9 = arith.constant dense<0.000000e+00> : vector<32x32xf32>
    %36 = tpu.matmul %34, %35, %cst_9 {dimension_numbers = #tpu.dot_dimension_numbers<[1], [1], [0], [0], [0, 0, 1, 0], [], []>} : vector<32x8xf32>, vector<32x8xf32>, vector<32x32xf32> -> vector<32x32xf32>
    %37 = arith.addf %33, %36 : vector<32x32xf32>
    %cst_10 = arith.constant 3.125000e-02 : f32
    %38 = vector.broadcast %cst_10 : f32 to vector<32x32xf32>
    %39 = arith.mulf %37, %38 : vector<32x32xf32>
    %c0_11 = arith.constant 0 : index
    %c0_12 = arith.constant 0 : index
    %40 = vector.load %arg3[%c0_11, %c0_12] : memref<32x32xf32, #tpu.memory_space<vmem>>, vector<32x32xf32>
    %41 = arith.addf %39, %40 : vector<32x32xf32>
    %cst_13 = arith.constant dense<0xFF800000> : vector<32xf32>
    %42 = vector.multi_reduction <maximumf>, %41, %cst_13 [1] : vector<32x32xf32> to vector<32xf32>
    %43 = vector.shape_cast %42 : vector<32xf32> to vector<32x1xf32>
    %44 = vector.broadcast %43 : vector<32x1xf32> to vector<32x32xf32>
    %45 = arith.subf %41, %44 : vector<32x32xf32>
    %46 = math.exp %45 : vector<32x32xf32>
    %cst_14 = arith.constant dense<0.000000e+00> : vector<32xf32>
    %47 = vector.multi_reduction <add>, %46, %cst_14 [1] : vector<32x32xf32> to vector<32xf32>
    %48 = vector.shape_cast %47 : vector<32xf32> to vector<32x1xf32>
    %49 = vector.broadcast %48 : vector<32x1xf32> to vector<32x32xf32>
    %50 = arith.divf %46, %49 : vector<32x32xf32>
    %cst_15 = arith.constant dense<0.000000e+00> : vector<32x32xf32>
    %51 = tpu.matmul %50, %19, %cst_15 {dimension_numbers = #tpu.dot_dimension_numbers<[1], [1], [0], [0], [0, 0, 1, 0], [], []>} : vector<32x32xf32>, vector<32x32xf32>, vector<32x32xf32> -> vector<32x32xf32>
    %c0_16 = arith.constant 0 : index
    %c0_17 = arith.constant 0 : index
    %52 = vector.load %arg4[%c0_16, %c0_17] : memref<128x128xbf16, #tpu.memory_space<vmem>>, vector<128x128xbf16>
    %cst_18 = arith.constant 0.000000e+00 : f32
    %53 = vector.broadcast %cst_18 : f32 to vector<8x128xf32>
    %54 = vector.extract_strided_slice %51 {offsets = [0, 0], sizes = [8, 32], strides = [1, 1]} : vector<32x32xf32> to vector<8x32xf32>
    %55 = arith.truncf %54 : vector<8x32xf32> to vector<8x32xbf16>
    %56 = vector.extract_strided_slice %52 {offsets = [0, 0], sizes = [32, 128], strides = [1, 1]} : vector<128x128xbf16> to vector<32x128xbf16>
    %cst_19 = arith.constant dense<0.000000e+00> : vector<8x128xf32>
    %57 = tpu.matmul %55, %56, %cst_19 {dimension_numbers = #tpu.dot_dimension_numbers<[1], [0], [0], [1], [0, 0, 1, 1], [], []>} : vector<8x32xbf16>, vector<32x128xbf16>, vector<8x128xf32> -> vector<8x128xf32>
    %58 = arith.addf %53, %57 : vector<8x128xf32>
    %59 = vector.extract_strided_slice %51 {offsets = [8, 0], sizes = [8, 32], strides = [1, 1]} : vector<32x32xf32> to vector<8x32xf32>
    %60 = arith.truncf %59 : vector<8x32xf32> to vector<8x32xbf16>
    %61 = vector.extract_strided_slice %52 {offsets = [32, 0], sizes = [32, 128], strides = [1, 1]} : vector<128x128xbf16> to vector<32x128xbf16>
    %cst_20 = arith.constant dense<0.000000e+00> : vector<8x128xf32>
    %62 = tpu.matmul %60, %61, %cst_20 {dimension_numbers = #tpu.dot_dimension_numbers<[1], [0], [0], [1], [0, 0, 1, 1], [], []>} : vector<8x32xbf16>, vector<32x128xbf16>, vector<8x128xf32> -> vector<8x128xf32>
    %63 = arith.addf %58, %62 : vector<8x128xf32>
    %64 = vector.extract_strided_slice %51 {offsets = [16, 0], sizes = [8, 32], strides = [1, 1]} : vector<32x32xf32> to vector<8x32xf32>
    %65 = arith.truncf %64 : vector<8x32xf32> to vector<8x32xbf16>
    %66 = vector.extract_strided_slice %52 {offsets = [64, 0], sizes = [32, 128], strides = [1, 1]} : vector<128x128xbf16> to vector<32x128xbf16>
    %cst_21 = arith.constant dense<0.000000e+00> : vector<8x128xf32>
    %67 = tpu.matmul %65, %66, %cst_21 {dimension_numbers = #tpu.dot_dimension_numbers<[1], [0], [0], [1], [0, 0, 1, 1], [], []>} : vector<8x32xbf16>, vector<32x128xbf16>, vector<8x128xf32> -> vector<8x128xf32>
    %68 = arith.addf %63, %67 : vector<8x128xf32>
    %69 = vector.extract_strided_slice %51 {offsets = [24, 0], sizes = [8, 32], strides = [1, 1]} : vector<32x32xf32> to vector<8x32xf32>
    %70 = arith.truncf %69 : vector<8x32xf32> to vector<8x32xbf16>
    %71 = vector.extract_strided_slice %52 {offsets = [96, 0], sizes = [32, 128], strides = [1, 1]} : vector<128x128xbf16> to vector<32x128xbf16>
    %cst_22 = arith.constant dense<0.000000e+00> : vector<8x128xf32>
    %72 = tpu.matmul %70, %71, %cst_22 {dimension_numbers = #tpu.dot_dimension_numbers<[1], [0], [0], [1], [0, 0, 1, 1], [], []>} : vector<8x32xbf16>, vector<32x128xbf16>, vector<8x128xf32> -> vector<8x128xf32>
    %73 = arith.addf %68, %72 : vector<8x128xf32>
    %c0_23 = arith.constant 0 : index
    %c0_24 = arith.constant 0 : index
    %74 = vector.load %arg5[%c0_23, %c0_24] : memref<1x128xf32, #tpu.memory_space<vmem>>, vector<1x128xf32>
    %75 = vector.broadcast %74 : vector<1x128xf32> to vector<8x128xf32>
    %76 = arith.addf %73, %75 : vector<8x128xf32>
    %c0_25 = arith.constant 0 : index
    %c0_26 = arith.constant 0 : index
    %77 = vector.load %arg6[%c0_25, %c0_26] : memref<8x128xf32, #tpu.memory_space<vmem>>, vector<8x128xf32>
    tpu.vector_store %arg6[%c0_25, %c0_26], %76 {strides = array<i32>} : memref<8x128xf32, #tpu.memory_space<vmem>>, vector<8x128xf32>,
    return
  }
}

</mosaic_0001>

<llo_original>
// kernel: mha_forward.1
$region0: #{mha_forward.1}
  #allocation0 [shape = 'u32[]', space=smem, size = 0x4, offset = 0x4, fixed_abs, tag = 'smem constant byte address 0x4 - core index']
  #allocation1 [shape = 'u32[144,128]{1,0:T(1,128)}', space=vmem, size = 0x12000, scoped, tag = 'internal scratch']
  %s0 = inlined_call_operand.hbm [shape: f32[8,128], index: 0, kind: input, shape index: {}]
  %s1 = inlined_call_operand.hbm [shape: bf16[128,384], index: 1, kind: input, shape index: {}]
  %s2 = inlined_call_operand.vmem [shape: f32[1,384], index: 2, kind: input, shape index: {}]
  %s3 = inlined_call_operand.hbm [shape: f32[32,32], index: 3, kind: input, shape index: {}]
  %s4 = inlined_call_operand.hbm [shape: bf16[128,128], index: 4, kind: input, shape index: {}]
  %s5 = inlined_call_operand.vmem [shape: f32[1,128], index: 5, kind: input, shape index: {}]
  %s6 = inlined_call_operand.hbm [shape: f32[8,128], index: 6, kind: output, shape index: {}]
  %s7 = sld [smem:[#allocation0]]
  $region50: #{mha_forward.1} parent=0
    _
  %s9 = ssub.s32 1, %s7
  %s10 = scalar_select 0, %s9, %s7
  $region1: #{mha_forward.1} parent=0
    #allocation2 [shape = 'u8[4096]{0}', space=vmem, size = 0x1000, scoped, tag = 'input window, operand 0, single buffered']
    #allocation3 [shape = 's32[1]{0}', space=sflag, size = 0x4, scoped, tag = 'scoped memory for mha_forward.1']
    #allocation4 [shape = 's32[1]{0}', space=sflag, size = 0x4, scoped, tag = 'scoped memory for mha_forward.1']
    #allocation5 [shape = 'u8[98304]{0}', space=vmem, size = 0x18000, scoped, tag = 'input window, operand 1, single buffered']
    #allocation6 [shape = 's32[1]{0}', space=sflag, size = 0x4, scoped, tag = 'scoped memory for mha_forward.1']
    #allocation7 [shape = 'u8[16384]{0}', space=vmem, size = 0x4000, scoped, tag = 'input window, operand 3, single buffered']
    #allocation8 [shape = 'u8[32768]{0}', space=vmem, size = 0x8000, scoped, tag = 'input window, operand 4, single buffered']
    #allocation9 [shape = 's32[1]{0}', space=sflag, size = 0x4, scoped, tag = 'scoped memory for mha_forward.1']
    #allocation10 [shape = 'u8[4096]{0}', space=vmem, size = 0x1000, scoped, tag = 'output window, operand 0, single buffered']
    %11 = vsyncpa [#allocation3], 0
    %12 = vsyncpa [#allocation6], 0
    %13 = vsyncpa [#allocation9], 0
    %14 = vsyncpa [#allocation4], 0
    // Predicated region
    $region2: #{mha_forward.1} parent=1 // pred_check
      _
    $region3: #{mha_forward.1} parent=1 // pred_check_branch
      %16 = sbr.rel (0) target = $region5
    $region4: #{mha_forward.1} parent=1 // pred_region
      %s18 = ssub.s32 128, 128
      %19 = vsyncadd [#allocation3], %s18
      %s21 = sshll.u32 [#allocation2], 4
      %s22 = int_to_ptr.vmem [resolvable:$true] %s21
      %24 = dma.hbm_to_vmem [thread:$0]  %s0, 128, %s22, [#allocation3]
    $region5: #{mha_forward.1} parent=1 // pred_fallthru
      _
    // Predicated region
    $region6: #{mha_forward.1} parent=1 // pred_check
      _
    $region7: #{mha_forward.1} parent=1 // pred_check_branch
      %26 = sbr.rel (0) target = $region9
    $region8: #{mha_forward.1} parent=1 // pred_region
      %s28 = ssub.s32 3072, 3072
      %29 = vsyncadd [#allocation6], %s28
      %s30 = sshll.u32 [#allocation5], 4
      %s31 = int_to_ptr.vmem [resolvable:$true] %s30
      %36 = dma.hbm_to_vmem [thread:$0]  %s1, 3072, %s31, [#allocation6], 192, 192, 12
    $region9: #{mha_forward.1} parent=1 // pred_fallthru
      _
    // Predicated region
    $region10: #{mha_forward.1} parent=1 // pred_check
      _
    $region11: #{mha_forward.1} parent=1 // pred_check_branch
      %38 = sbr.rel (0) target = $region13
    $region12: #{mha_forward.1} parent=1 // pred_region
      _
    $region13: #{mha_forward.1} parent=1 // pred_fallthru
      _
    // Predicated region
    $region14: #{mha_forward.1} parent=1 // pred_check
      _
    $region15: #{mha_forward.1} parent=1 // pred_check_branch
      %40 = sbr.rel (0) target = $region17
    $region16: #{mha_forward.1} parent=1 // pred_region
      %s42 = ssub.s32 512, 512
      %43 = vsyncadd [#allocation6], %s42
      %s44 = sshll.u32 [#allocation7], 4
      %s45 = int_to_ptr.vmem [resolvable:$true] %s44
      %50 = dma.hbm_to_vmem [thread:$0]  %s3, 512, %s45, [#allocation6], 128, 128, 8
    $region17: #{mha_forward.1} parent=1 // pred_fallthru
      _
    // Predicated region
    $region18: #{mha_forward.1} parent=1 // pred_check
      _
    $region19: #{mha_forward.1} parent=1 // pred_check_branch
      %52 = sbr.rel (0) target = $region21
    $region20: #{mha_forward.1} parent=1 // pred_region
      %s54 = ssub.s32 1024, 1024
      %55 = vsyncadd [#allocation9], %s54
      %s56 = sshll.u32 [#allocation8], 4
      %s57 = int_to_ptr.vmem [resolvable:$true] %s56
      %62 = dma.hbm_to_vmem [thread:$0]  %s4, 1024, %s57, [#allocation9], 64, 64, 4
    $region21: #{mha_forward.1} parent=1 // pred_fallthru
      _
    // Predicated region
    $region22: #{mha_forward.1} parent=1 // pred_check
      _
    $region23: #{mha_forward.1} parent=1 // pred_check_branch
      %64 = sbr.rel (0) target = $region25
    $region24: #{mha_forward.1} parent=1 // pred_region
      _
    $region25: #{mha_forward.1} parent=1 // pred_fallthru
      _
    // Predicated region
    $region26: #{mha_forward.1} parent=1 // pred_check
      _
    $region27: #{mha_forward.1} parent=1 // pred_check_branch
      %66 = sbr.rel (0) target = $region29
    $region28: #{mha_forward.1} parent=1 // pred_region
      %67 = dma.done [#allocation3], 128
    $region29: #{mha_forward.1} parent=1 // pred_fallthru
      _
    // Predicated region
    $region30: #{mha_forward.1} parent=1 // pred_check
      _
    $region31: #{mha_forward.1} parent=1 // pred_check_branch
      %69 = sbr.rel (0) target = $region33
    $region32: #{mha_forward.1} parent=1 // pred_region
      %70 = dma.done [#allocation6], 3072
    $region33: #{mha_forward.1} parent=1 // pred_fallthru
      _
    // Predicated region
    $region34: #{mha_forward.1} parent=1 // pred_check
      _
    $region35: #{mha_forward.1} parent=1 // pred_check_branch
      %72 = sbr.rel (0) target = $region37
    $region36: #{mha_forward.1} parent=1 // pred_region
      %73 = dma.done [#allocation6], 512
    $region37: #{mha_forward.1} parent=1 // pred_fallthru
      _
    // Predicated region
    $region38: #{mha_forward.1} parent=1 // pred_check
      _
    $region39: #{mha_forward.1} parent=1 // pred_check_branch
      %75 = sbr.rel (0) target = $region41
    $region40: #{mha_forward.1} parent=1 // pred_region
      %76 = dma.done [#allocation9], 1024
    $region41: #{mha_forward.1} parent=1 // pred_fallthru
      _
    %v78 = vld [vmem:[#allocation2] sm:$0xff]
    %v79 = vpack.c.bf16 %v78, %v78
    %v80 = vld [vmem:[#allocation5] sm:$0xff]
    %v81 = vld [vmem:[#allocation5 + $0x8] sm:$0xf]
    %v82 = vld [vmem:[#allocation5 + $0xc] sm:$0xff]
    %v83 = vld [vmem:[#allocation5 + $0x14] sm:$0xf]
    %v84 = vld [vmem:[#allocation5 + $0x18] sm:$0xff]
    %v85 = vld [vmem:[#allocation5 + $0x20] sm:$0xf]
    %v86 = vld [vmem:[#allocation5 + $0x24] sm:$0xff]
    %v87 = vld [vmem:[#allocation5 + $0x2c] sm:$0xf]
    %v88 = vld [vmem:[#allocation5 + $0x30] sm:$0xff]
    %v89 = vld [vmem:[#allocation5 + $0x38] sm:$0xf]
    %v90 = vld [vmem:[#allocation5 + $0x3c] sm:$0xff]
    %v91 = vld [vmem:[#allocation5 + $0x44] sm:$0xf]
    %v92 = vld [vmem:[#allocation5 + $0x48] sm:$0xff]
    %v93 = vld [vmem:[#allocation5 + $0x50] sm:$0xf]
    %v94 = vld [vmem:[#allocation5 + $0x54] sm:$0xff]
    %v95 = vld [vmem:[#allocation5 + $0x5c] sm:$0xf]
    %v96 = vld [vmem:[#allocation5 + $0x60] sm:$0xff]
    %v97 = vld [vmem:[#allocation5 + $0x68] sm:$0xf]
    %v98 = vld [vmem:[#allocation5 + $0x6c] sm:$0xff]
    %v99 = vld [vmem:[#allocation5 + $0x74] sm:$0xf]
    %v100 = vld [vmem:[#allocation5 + $0x78] sm:$0xff]
    %v101 = vld [vmem:[#allocation5 + $0x80] sm:$0xf]
    %v102 = vld [vmem:[#allocation5 + $0x84] sm:$0xff]
    %v103 = vld [vmem:[#allocation5 + $0x8c] sm:$0xf]
    %v104 = vld [vmem:[#allocation5 + $0x90] sm:$0xff]
    %v105 = vld [vmem:[#allocation5 + $0x98] sm:$0xf]
    %v106 = vld [vmem:[#allocation5 + $0x9c] sm:$0xff]
    %v107 = vld [vmem:[#allocation5 + $0xa4] sm:$0xf]
    %v108 = vld [vmem:[#allocation5 + $0xa8] sm:$0xff]
    %v109 = vld [vmem:[#allocation5 + $0xb0] sm:$0xf]
    %v110 = vld [vmem:[#allocation5 + $0xb4] sm:$0xff]
    %v111 = vld [vmem:[#allocation5 + $0xbc] sm:$0xf]
    %v112 = vld [vmem:[%s2] sm:$0x7]
    %v114 = vlaneseq
    %v115 = vshrl.u32 %v114, 7
    %v116 = vsub.s32 0, %v115
    %v117 = vrot.slane %v112, %v116
    %v118 = vlaneseq
    %v119 = vshrl.u32 %v118, 7
    %v120 = vsub.s32 1, %v119
    %v121 = vrot.slane %v112, %v120
    %v122 = vlaneseq
    %v123 = vshrl.u32 %v122, 7
    %v124 = vsub.s32 2, %v123
    %v125 = vrot.slane %v112, %v124
    %v161 = vunpack.c.l.b16 %v80
    %v162 = vunpack.c.h.b16 %v80
    %v163 = vunpack.c.l.b16 %v81
    %v164 = vunpack.c.l.b16 %v82
    %v165 = vunpack.c.h.b16 %v82
    %v166 = vunpack.c.l.b16 %v83
    %v167 = vunpack.c.l.b16 %v84
    %v168 = vunpack.c.h.b16 %v84
    %v169 = vunpack.c.l.b16 %v85
    %v170 = vunpack.c.l.b16 %v86
    %v171 = vunpack.c.h.b16 %v86
    %v172 = vunpack.c.l.b16 %v87
    %v173 = vunpack.c.l.b16 %v88
    %v174 = vunpack.c.h.b16 %v88
    %v175 = vunpack.c.l.b16 %v89
    %v176 = vunpack.c.l.b16 %v90
    %v177 = vunpack.c.h.b16 %v90
    %v178 = vunpack.c.l.b16 %v91
    %v179 = vunpack.c.l.b16 %v92
    %v180 = vunpack.c.h.b16 %v92
    %v181 = vunpack.c.l.b16 %v93
    %v182 = vunpack.c.l.b16 %v94
    %v183 = vunpack.c.h.b16 %v94
    %v184 = vunpack.c.l.b16 %v95
    %v185 = vunpack.c.l.b16 %v96
    %v186 = vunpack.c.h.b16 %v96
    %v187 = vunpack.c.l.b16 %v97
    %v188 = vunpack.c.l.b16 %v98
    %v189 = vunpack.c.h.b16 %v98
    %v190 = vunpack.c.l.b16 %v99
    %v191 = vunpack.c.l.b16 %v100
    %v192 = vunpack.c.h.b16 %v100
    %v193 = vunpack.c.l.b16 %v101
    %v194 = vunpack.c.l.b16 %v102
    %v195 = vunpack.c.h.b16 %v102
    %v196 = vunpack.c.l.b16 %v103
    %v197 = vunpack.c.l.b16 %v104
    %v198 = vunpack.c.h.b16 %v104
    %v199 = vunpack.c.l.b16 %v105
    %v200 = vunpack.c.l.b16 %v106
    %v201 = vunpack.c.h.b16 %v106
    %v202 = vunpack.c.l.b16 %v107
    %v203 = vunpack.c.l.b16 %v108
    %v204 = vunpack.c.h.b16 %v108
    %v205 = vunpack.c.l.b16 %v109
    %v206 = vunpack.c.l.b16 %v110
    %v207 = vunpack.c.h.b16 %v110
    %v208 = vunpack.c.l.b16 %v111
    %v209 = vpack.c.b16 %v164, %v161
    %v210 = vpack.c.b16 %v165, %v162
    %v211 = vpack.c.b16 %v166, %v163
    %v212 = vpack.c.b16 %v170, %v167
    %v213 = vpack.c.b16 %v171, %v168
    %v214 = vpack.c.b16 %v172, %v169
    %v215 = vpack.c.b16 %v176, %v173
    %v216 = vpack.c.b16 %v177, %v174
    %v217 = vpack.c.b16 %v178, %v175
    %v218 = vpack.c.b16 %v182, %v179
    %v219 = vpack.c.b16 %v183, %v180
    %v220 = vpack.c.b16 %v184, %v181
    %v221 = vpack.c.b16 %v188, %v185
    %v222 = vpack.c.b16 %v189, %v186
    %v223 = vpack.c.b16 %v190, %v187
    %v224 = vpack.c.b16 %v194, %v191
    %v225 = vpack.c.b16 %v195, %v192
    %v226 = vpack.c.b16 %v196, %v193
    %v227 = vpack.c.b16 %v200, %v197
    %v228 = vpack.c.b16 %v201, %v198
    %v229 = vpack.c.b16 %v202, %v199
    %v230 = vpack.c.b16 %v206, %v203
    %v231 = vpack.c.b16 %v207, %v204
    %v232 = vpack.c.b16 %v208, %v205
    %257 = vmatprep.subr.bf16.mxu0 %v210
    %258 = vmatpush1.bf16.msra.mxu0 %v209
    %259 = vmatprep.subr.bf16.mxu0 %v213
    %260 = vmatpush1.bf16.msra.mxu0 %v212
    %261 = vmatprep.subr.bf16.mxu0 %v216
    %262 = vmatpush1.bf16.msra.mxu0 %v215
    %263 = vmatprep.subr.bf16.mxu0 %v219
    %264 = vmatpush1.bf16.msra.mxu0 %v218
    %265 = vmatprep.subr.bf16.mxu0 %v222
    %266 = vmatpush1.bf16.msra.mxu0 %v221
    %267 = vmatprep.subr.bf16.mxu0 %v225
    %268 = vmatpush1.bf16.msra.mxu0 %v224
    %269 = vmatprep.subr.bf16.mxu0 %v228
    %270 = vmatpush1.bf16.msra.mxu0 %v227
    %271 = vmatprep.subr.bf16.mxu0 %v231
    %272 = vmatpush1.bf16.msra.mxu0 %v230
    %273 = vmatprep.subr.bf16.mxu0 0
    %274 = vmatpush1.bf16.msra.mxu0 0
    %275 = vmatprep.subr.bf16.mxu0 0
    %276 = vmatpush1.bf16.msra.mxu0 0
    %277 = vmatprep.subr.bf16.mxu0 0
    %278 = vmatpush1.bf16.msra.mxu0 0
    %279 = vmatprep.subr.bf16.mxu0 0
    %280 = vmatpush1.bf16.msra.mxu0 0
    %281 = vmatprep.subr.bf16.mxu0 0
    %282 = vmatpush1.bf16.msra.mxu0 0
    %283 = vmatprep.subr.bf16.mxu0 0
    %284 = vmatpush1.bf16.msra.mxu0 0
    %285 = vmatprep.subr.bf16.mxu0 0
    %286 = vmatpush1.bf16.msra.mxu0 0
    %287 = vmatprep.subr.bf16.mxu0 0
    %288 = vmatpush1.bf16.msra.mxu0 0
    %289 = vmatprep.mubr.bf16.mxu0 0
    %290 = vmatmul.mubr.bf16.gmra.mrb[0].mxu0 %v79
    %v291 = vpop.f32.mrb[0].mxu0
    %v292 = vadd.f32 %v117, %v291
    %v293 = vpop.f32.mrb[0].mxu0
    %v294 = vadd.f32 %v121, %v293
    %v295 = vpop.f32.mrb[0].mxu0
    %v296 = vpop.f32.mrb[0].mxu0
    %297 = vdwg.mxu0
    %298 = vmatprep.subr.bf16.mxu0 0
    %299 = vmatpush1.bf16.msra.mxu0 %v211
    %300 = vmatprep.subr.bf16.mxu0 0
    %301 = vmatpush1.bf16.msra.mxu0 %v214
    %302 = vmatprep.subr.bf16.mxu0 0
    %303 = vmatpush1.bf16.msra.mxu0 %v217
    %304 = vmatprep.subr.bf16.mxu0 0
    %305 = vmatpush1.bf16.msra.mxu0 %v220
    %306 = vmatprep.subr.bf16.mxu0 0
    %307 = vmatpush1.bf16.msra.mxu0 %v223
    %308 = vmatprep.subr.bf16.mxu0 0
    %309 = vmatpush1.bf16.msra.mxu0 %v226
    %310 = vmatprep.subr.bf16.mxu0 0
    %311 = vmatpush1.bf16.msra.mxu0 %v229
    %312 = vmatprep.subr.bf16.mxu0 0
    %313 = vmatpush1.bf16.msra.mxu0 %v232
    %314 = vmatprep.subr.bf16.mxu0 0
    %315 = vmatpush1.bf16.msra.mxu0 0
    %316 = vmatprep.subr.bf16.mxu0 0
    %317 = vmatpush1.bf16.msra.mxu0 0
    %318 = vmatprep.subr.bf16.mxu0 0
    %319 = vmatpush1.bf16.msra.mxu0 0
    %320 = vmatprep.subr.bf16.mxu0 0
    %321 = vmatpush1.bf16.msra.mxu0 0
    %322 = vmatprep.subr.bf16.mxu0 0
    %323 = vmatpush1.bf16.msra.mxu0 0
    %324 = vmatprep.subr.bf16.mxu0 0
    %325 = vmatpush1.bf16.msra.mxu0 0
    %326 = vmatprep.subr.bf16.mxu0 0
    %327 = vmatpush1.bf16.msra.mxu0 0
    %328 = vmatprep.subr.bf16.mxu0 0
    %329 = vmatpush1.bf16.msra.mxu0 0
    %330 = vmatprep.mubr.bf16.mxu0 0
    %331 = vmatmul.mubr.bf16.gmra.mrb[0].mxu0 %v79
    %v332 = vpop.f32.mrb[0].mxu0
    %v333 = vadd.f32 %v125, %v332
    %v334 = vpop.f32.mrb[0].mxu0
    %v335 = vpop.f32.mrb[0].mxu0
    %v336 = vpop.f32.mrb[0].mxu0
    %337 = vdwg.mxu0
    %339 = vrot.lane.b32.xlu0 %v292, 96
    %v340 = vpop.permute.xlu0 %339
    %341 = vrot.lane.b32.xlu0 %v292, 64
    %v342 = vpop.permute.xlu0 %341
    %343 = vrot.lane.b32.xlu0 %v292, 32
    %v344 = vpop.permute.xlu0 %343
    %346 = vrot.lane.b32.xlu0 %v333, 96
    %v347 = vpop.permute.xlu0 %346
    %348 = vrot.lane.b32.xlu0 %v333, 64
    %v349 = vpop.permute.xlu0 %348
    %350 = vrot.lane.b32.xlu0 %v333, 32
    %v351 = vpop.permute.xlu0 %350
    %352 = vxpose.xlu0.b32.start [1/16] %v294, 128
    %353 = vxpose.xlu0.b32.cont [2/16] 0.0, 128
    %354 = vxpose.xlu0.b32.cont [3/16] 0.0, 128
    %355 = vxpose.xlu0.b32.cont [4/16] 0.0, 128
    %356 = vxpose.xlu0.b32.cont [5/16] 0.0, 128
    %357 = vxpose.xlu0.b32.cont [6/16] 0.0, 128
    %358 = vxpose.xlu0.b32.cont [7/16] 0.0, 128
    %359 = vxpose.xlu0.b32.cont [8/16] 0.0, 128
    %360 = vxpose.xlu0.b32.cont [9/16] 0.0, 128
    %361 = vxpose.xlu0.b32.cont [10/16] 0.0, 128
    %362 = vxpose.xlu0.b32.cont [11/16] 0.0, 128
    %363 = vxpose.xlu0.b32.cont [12/16] 0.0, 128
    %364 = vxpose.xlu0.b32.cont [13/16] 0.0, 128
    %365 = vxpose.xlu0.b32.cont [14/16] 0.0, 128
    %366 = vxpose.xlu0.b32.cont [15/16] 0.0, 128
    %367 = vxpose.xlu0.b32.end [16/16] 0.0, 128
    %v368 = vpop.trf.xlu0
    %v369 = vpop.trf.xlu0
    %v370 = vpop.trf.xlu0
    %v371 = vpop.trf.xlu0
    %v372 = vpop.trf.xlu0
    %v373 = vpop.trf.xlu0
    %v374 = vpop.trf.xlu0
    %v375 = vpop.trf.xlu0
    %v376 = vpop.trf.xlu0
    %v377 = vpop.trf.xlu0
    %v378 = vpop.trf.xlu0
    %v379 = vpop.trf.xlu0
    %v380 = vpop.trf.xlu0
    %v381 = vpop.trf.xlu0
    %v382 = vpop.trf.xlu0
    %v383 = vpop.trf.xlu0
    %384 = vrot.lane.b32.xlu0 %v292, 120
    %v385 = vpop.permute.xlu0 %384
    %386 = vrot.lane.b32.xlu0 %v340, 120
    %v387 = vpop.permute.xlu0 %386
    %388 = vrot.lane.b32.xlu0 %v342, 120
    %v389 = vpop.permute.xlu0 %388
    %390 = vrot.lane.b32.xlu0 %v344, 120
    %v391 = vpop.permute.xlu0 %390
    %vm392 = vcmask 64512
    %v394 = vsel %vm392, %v372, 0
    %v397 = vsel %vm392, %v373, 0
    %v400 = vsel %vm392, %v374, 0
    %v403 = vsel %vm392, %v375, 0
    %v405 = vsel %vm392, %v385, 0
    %v407 = vsel %vm392, %v387, 0
    %v409 = vsel %vm392, %v389, 0
    %v411 = vsel %vm392, %v391, 0
    %413 = vmatprep.subr.mxu0 0.0
    %414 = vmatpush1.xpose.msra.mxu0 %v405
    %415 = vmatprep.subr.mxu0 0.0
    %416 = vmatpush1.xpose.msra.mxu0 %v407
    %417 = vmatprep.subr.mxu0 0.0
    %418 = vmatpush1.xpose.msra.mxu0 %v409
    %419 = vmatprep.subr.mxu0 0.0
    %420 = vmatpush1.xpose.msra.mxu0 %v411
    %421 = vmatprep.subr.mxu0 0.0
    %422 = vmatpush1.xpose.msra.mxu0 0.0
    %423 = vmatprep.subr.mxu0 0.0
    %424 = vmatpush1.xpose.msra.mxu0 0.0
    %425 = vmatprep.subr.mxu0 0.0
    %426 = vmatpush1.xpose.msra.mxu0 0.0
    %427 = vmatprep.subr.mxu0 0.0
    %428 = vmatpush1.xpose.msra.mxu0 0.0
    %429 = vmatprep.subr.mxu0 0.0
    %430 = vmatpush1.xpose.msra.mxu0 0.0
    %431 = vmatprep.subr.mxu0 0.0
    %432 = vmatpush1.xpose.msra.mxu0 0.0
    %433 = vmatprep.subr.mxu0 0.0
    %434 = vmatpush1.xpose.msra.mxu0 0.0
    %435 = vmatprep.subr.mxu0 0.0
    %436 = vmatpush1.xpose.msra.mxu0 0.0
    %437 = vmatprep.subr.mxu0 0.0
    %438 = vmatpush1.xpose.msra.mxu0 0.0
    %439 = vmatprep.subr.mxu0 0.0
    %440 = vmatpush1.xpose.msra.mxu0 0.0
    %441 = vmatprep.subr.mxu0 0.0
    %442 = vmatpush1.xpose.msra.mxu0 0.0
    %443 = vmatprep.subr.mxu0 0.0
    %444 = vmatpush1.xpose.msra.mxu0 0.0
    %445 = vmatprep.subr.mxu0 0.0
    %446 = vmatpush1.xpose.msra.mxu0 0.0
    %447 = vmatprep.subr.mxu0 0.0
    %448 = vmatpush1.xpose.msra.mxu0 0.0
    %449 = vmatprep.subr.mxu0 0.0
    %450 = vmatpush1.xpose.msra.mxu0 0.0
    %451 = vmatprep.subr.mxu0 0.0
    %452 = vmatpush1.xpose.msra.mxu0 0.0
    %453 = vmatprep.subr.mxu0 0.0
    %454 = vmatpush1.xpose.msra.mxu0 0.0
    %455 = vmatprep.subr.mxu0 0.0
    %456 = vmatpush1.xpose.msra.mxu0 0.0
    %457 = vmatprep.subr.mxu0 0.0
    %458 = vmatpush1.xpose.msra.mxu0 0.0
    %459 = vmatprep.subr.mxu0 0.0
    %460 = vmatpush1.xpose.msra.mxu0 0.0
    %461 = vmatprep.subr.mxu0 0.0
    %462 = vmatpush1.xpose.msra.mxu0 0.0
    %463 = vmatprep.subr.mxu0 0.0
    %464 = vmatpush1.xpose.msra.mxu0 0.0
    %465 = vmatprep.subr.mxu0 0.0
    %466 = vmatpush1.xpose.msra.mxu0 0.0
    %467 = vmatprep.subr.mxu0 0.0
    %468 = vmatpush1.xpose.msra.mxu0 0.0
    %469 = vmatprep.subr.mxu0 0.0
    %470 = vmatpush1.xpose.msra.mxu0 0.0
    %471 = vmatprep.subr.mxu0 0.0
    %472 = vmatpush1.xpose.msra.mxu0 0.0
    %473 = vmatprep.subr.mxu0 0.0
    %474 = vmatpush1.xpose.msra.mxu0 0.0
    %475 = vmatprep.subr.mxu0 0.0
    %476 = vmatpush1.xpose.msra.mxu0 0.0
    %477 = vmatprep.mubr.f32.mxu0 0.0
    %478 = vmatmul.mubr.f32.gmra.mrb[0].mxu0 %v394
    %v479 = vpop.f32.mrb[0].mxu0
    %v480 = vadd.f32 0.0, %v479
    %v481 = vpop.f32.mrb[0].mxu0
    %482 = vmatprep.mubr.f32.mxu0 0.0
    %483 = vmatmul.mubr.f32.gmra.mrb[0].mxu0 %v397
    %v484 = vpop.f32.mrb[0].mxu0
    %v485 = vadd.f32 0.0, %v484
    %v486 = vpop.f32.mrb[0].mxu0
    %487 = vmatprep.mubr.f32.mxu0 0.0
    %488 = vmatmul.mubr.f32.gmra.mrb[0].mxu0 %v400
    %v489 = vpop.f32.mrb[0].mxu0
    %v490 = vadd.f32 0.0, %v489
    %v491 = vpop.f32.mrb[0].mxu0
    %492 = vmatprep.mubr.f32.mxu0 0.0
    %493 = vmatmul.mubr.f32.gmra.mrb[0].mxu0 %v403
    %v494 = vpop.f32.mrb[0].mxu0
    %v495 = vadd.f32 0.0, %v494
    %v496 = vpop.f32.mrb[0].mxu0
    %497 = vdwg.mxu0
    %v499 = vsel %vm392, %v368, 0
    %v502 = vsel %vm392, %v369, 0
    %v505 = vsel %vm392, %v370, 0
    %v508 = vsel %vm392, %v371, 0
    %v510 = vsel %vm392, %v292, 0
    %v512 = vsel %vm392, %v340, 0
    %v514 = vsel %vm392, %v342, 0
    %v516 = vsel %vm392, %v344, 0
    %518 = vmatprep.subr.mxu0 0.0
    %519 = vmatpush1.xpose.msra.mxu0 %v510
    %520 = vmatprep.subr.mxu0 0.0
    %521 = vmatpush1.xpose.msra.mxu0 %v512
    %522 = vmatprep.subr.mxu0 0.0
    %523 = vmatpush1.xpose.msra.mxu0 %v514
    %524 = vmatprep.subr.mxu0 0.0
    %525 = vmatpush1.xpose.msra.mxu0 %v516
    %526 = vmatprep.subr.mxu0 0.0
    %527 = vmatpush1.xpose.msra.mxu0 0.0
    %528 = vmatprep.subr.mxu0 0.0
    %529 = vmatpush1.xpose.msra.mxu0 0.0
    %530 = vmatprep.subr.mxu0 0.0
    %531 = vmatpush1.xpose.msra.mxu0 0.0
    %532 = vmatprep.subr.mxu0 0.0
    %533 = vmatpush1.xpose.msra.mxu0 0.0
    %534 = vmatprep.subr.mxu0 0.0
    %535 = vmatpush1.xpose.msra.mxu0 0.0
    %536 = vmatprep.subr.mxu0 0.0
    %537 = vmatpush1.xpose.msra.mxu0 0.0
    %538 = vmatprep.subr.mxu0 0.0
    %539 = vmatpush1.xpose.msra.mxu0 0.0
    %540 = vmatprep.subr.mxu0 0.0
    %541 = vmatpush1.xpose.msra.mxu0 0.0
    %542 = vmatprep.subr.mxu0 0.0
    %543 = vmatpush1.xpose.msra.mxu0 0.0
    %544 = vmatprep.subr.mxu0 0.0
    %545 = vmatpush1.xpose.msra.mxu0 0.0
    %546 = vmatprep.subr.mxu0 0.0
    %547 = vmatpush1.xpose.msra.mxu0 0.0
    %548 = vmatprep.subr.mxu0 0.0
    %549 = vmatpush1.xpose.msra.mxu0 0.0
    %550 = vmatprep.subr.mxu0 0.0
    %551 = vmatpush1.xpose.msra.mxu0 0.0
    %552 = vmatprep.subr.mxu0 0.0
    %553 = vmatpush1.xpose.msra.mxu0 0.0
    %554 = vmatprep.subr.mxu0 0.0
    %555 = vmatpush1.xpose.msra.mxu0 0.0
    %556 = vmatprep.subr.mxu0 0.0
    %557 = vmatpush1.xpose.msra.mxu0 0.0
    %558 = vmatprep.subr.mxu0 0.0
    %559 = vmatpush1.xpose.msra.mxu0 0.0
    %560 = vmatprep.subr.mxu0 0.0
    %561 = vmatpush1.xpose.msra.mxu0 0.0
    %562 = vmatprep.subr.mxu0 0.0
    %563 = vmatpush1.xpose.msra.mxu0 0.0
    %564 = vmatprep.subr.mxu0 0.0
    %565 = vmatpush1.xpose.msra.mxu0 0.0
    %566 = vmatprep.subr.mxu0 0.0
    %567 = vmatpush1.xpose.msra.mxu0 0.0
    %568 = vmatprep.subr.mxu0 0.0
    %569 = vmatpush1.xpose.msra.mxu0 0.0
    %570 = vmatprep.subr.mxu0 0.0
    %571 = vmatpush1.xpose.msra.mxu0 0.0
    %572 = vmatprep.subr.mxu0 0.0
    %573 = vmatpush1.xpose.msra.mxu0 0.0
    %574 = vmatprep.subr.mxu0 0.0
    %575 = vmatpush1.xpose.msra.mxu0 0.0
    %576 = vmatprep.subr.mxu0 0.0
    %577 = vmatpush1.xpose.msra.mxu0 0.0
    %578 = vmatprep.subr.mxu0 0.0
    %579 = vmatpush1.xpose.msra.mxu0 0.0
    %580 = vmatprep.subr.mxu0 0.0
    %581 = vmatpush1.xpose.msra.mxu0 0.0
    %582 = vmatprep.mubr.f32.mxu0 0.0
    %583 = vmatmul.mubr.f32.gmra.mrb[0].mxu0 %v499
    %v584 = vpop.f32.mrb[0].mxu0
    %v585 = vadd.f32 %v480, %v584
    %v586 = vpop.f32.mrb[0].mxu0
    %587 = vmatprep.mubr.f32.mxu0 0.0
    %588 = vmatmul.mubr.f32.gmra.mrb[0].mxu0 %v502
    %v589 = vpop.f32.mrb[0].mxu0
    %v590 = vadd.f32 %v485, %v589
    %v591 = vpop.f32.mrb[0].mxu0
    %592 = vmatprep.mubr.f32.mxu0 0.0
    %593 = vmatmul.mubr.f32.gmra.mrb[0].mxu0 %v505
    %v594 = vpop.f32.mrb[0].mxu0
    %v595 = vadd.f32 %v490, %v594
    %v596 = vpop.f32.mrb[0].mxu0
    %597 = vmatprep.mubr.f32.mxu0 0.0
    %598 = vmatmul.mubr.f32.gmra.mrb[0].mxu0 %v508
    %v599 = vpop.f32.mrb[0].mxu0
    %v600 = vadd.f32 %v495, %v599
    %v601 = vpop.f32.mrb[0].mxu0
    %602 = vdwg.mxu0
    %603 = vrot.lane.b32.xlu0 %v292, 112
    %v604 = vpop.permute.xlu0 %603
    %605 = vrot.lane.b32.xlu0 %v340, 112
    %v606 = vpop.permute.xlu0 %605
    %607 = vrot.lane.b32.xlu0 %v342, 112
    %v608 = vpop.permute.xlu0 %607
    %609 = vrot.lane.b32.xlu0 %v344, 112
    %v610 = vpop.permute.xlu0 %609
    %v612 = vsel %vm392, %v376, 0
    %v615 = vsel %vm392, %v377, 0
    %v618 = vsel %vm392, %v378, 0
    %v621 = vsel %vm392, %v379, 0
    %v623 = vsel %vm392, %v604, 0
    %v625 = vsel %vm392, %v606, 0
    %v627 = vsel %vm392, %v608, 0
    %v629 = vsel %vm392, %v610, 0
    %631 = vmatprep.subr.mxu0 0.0
    %632 = vmatpush1.xpose.msra.mxu0 %v623
    %633 = vmatprep.subr.mxu0 0.0
    %634 = vmatpush1.xpose.msra.mxu0 %v625
    %635 = vmatprep.subr.mxu0 0.0
    %636 = vmatpush1.xpose.msra.mxu0 %v627
    %637 = vmatprep.subr.mxu0 0.0
    %638 = vmatpush1.xpose.msra.mxu0 %v629
    %639 = vmatprep.subr.mxu0 0.0
    %640 = vmatpush1.xpose.msra.mxu0 0.0
    %641 = vmatprep.subr.mxu0 0.0
    %642 = vmatpush1.xpose.msra.mxu0 0.0
    %643 = vmatprep.subr.mxu0 0.0
    %644 = vmatpush1.xpose.msra.mxu0 0.0
    %645 = vmatprep.subr.mxu0 0.0
    %646 = vmatpush1.xpose.msra.mxu0 0.0
    %647 = vmatprep.subr.mxu0 0.0
    %648 = vmatpush1.xpose.msra.mxu0 0.0
    %649 = vmatprep.subr.mxu0 0.0
    %650 = vmatpush1.xpose.msra.mxu0 0.0
    %651 = vmatprep.subr.mxu0 0.0
    %652 = vmatpush1.xpose.msra.mxu0 0.0
    %653 = vmatprep.subr.mxu0 0.0
    %654 = vmatpush1.xpose.msra.mxu0 0.0
    %655 = vmatprep.subr.mxu0 0.0
    %656 = vmatpush1.xpose.msra.mxu0 0.0
    %657 = vmatprep.subr.mxu0 0.0
    %658 = vmatpush1.xpose.msra.mxu0 0.0
    %659 = vmatprep.subr.mxu0 0.0
    %660 = vmatpush1.xpose.msra.mxu0 0.0
    %661 = vmatprep.subr.mxu0 0.0
    %662 = vmatpush1.xpose.msra.mxu0 0.0
    %663 = vmatprep.subr.mxu0 0.0
    %664 = vmatpush1.xpose.msra.mxu0 0.0
    %665 = vmatprep.subr.mxu0 0.0
    %666 = vmatpush1.xpose.msra.mxu0 0.0
    %667 = vmatprep.subr.mxu0 0.0
    %668 = vmatpush1.xpose.msra.mxu0 0.0
    %669 = vmatprep.subr.mxu0 0.0
    %670 = vmatpush1.xpose.msra.mxu0 0.0
    %671 = vmatprep.subr.mxu0 0.0
    %672 = vmatpush1.xpose.msra.mxu0 0.0
    %673 = vmatprep.subr.mxu0 0.0
    %674 = vmatpush1.xpose.msra.mxu0 0.0
    %675 = vmatprep.subr.mxu0 0.0
    %676 = vmatpush1.xpose.msra.mxu0 0.0
    %677 = vmatprep.subr.mxu0 0.0
    %678 = vmatpush1.xpose.msra.mxu0 0.0
    %679 = vmatprep.subr.mxu0 0.0
    %680 = vmatpush1.xpose.msra.mxu0 0.0
    %681 = vmatprep.subr.mxu0 0.0
    %682 = vmatpush1.xpose.msra.mxu0 0.0
    %683 = vmatprep.subr.mxu0 0.0
    %684 = vmatpush1.xpose.msra.mxu0 0.0
    %685 = vmatprep.subr.mxu0 0.0
    %686 = vmatpush1.xpose.msra.mxu0 0.0
    %687 = vmatprep.subr.mxu0 0.0
    %688 = vmatpush1.xpose.msra.mxu0 0.0
    %689 = vmatprep.subr.mxu0 0.0
    %690 = vmatpush1.xpose.msra.mxu0 0.0
    %691 = vmatprep.subr.mxu0 0.0
    %692 = vmatpush1.xpose.msra.mxu0 0.0
    %693 = vmatprep.subr.mxu0 0.0
    %694 = vmatpush1.xpose.msra.mxu0 0.0
    %695 = vmatprep.mubr.f32.mxu0 0.0
    %696 = vmatmul.mubr.f32.gmra.mrb[0].mxu0 %v612
    %v697 = vpop.f32.mrb[0].mxu0
    %v698 = vadd.f32 0.0, %v697
    %v699 = vpop.f32.mrb[0].mxu0
    %700 = vmatprep.mubr.f32.mxu0 0.0
    %701 = vmatmul.mubr.f32.gmra.mrb[0].mxu0 %v615
    %v702 = vpop.f32.mrb[0].mxu0
    %v703 = vadd.f32 0.0, %v702
    %v704 = vpop.f32.mrb[0].mxu0
    %705 = vmatprep.mubr.f32.mxu0 0.0
    %706 = vmatmul.mubr.f32.gmra.mrb[0].mxu0 %v618
    %v707 = vpop.f32.mrb[0].mxu0
    %v708 = vadd.f32 0.0, %v707
    %v709 = vpop.f32.mrb[0].mxu0
    %710 = vmatprep.mubr.f32.mxu0 0.0
    %711 = vmatmul.mubr.f32.gmra.mrb[0].mxu0 %v621
    %v712 = vpop.f32.mrb[0].mxu0
    %v713 = vadd.f32 0.0, %v712
    %v714 = vpop.f32.mrb[0].mxu0
    %715 = vdwg.mxu0
    %v716 = vadd.f32 %v585, %v698
    %v717 = vadd.f32 %v590, %v703
    %v718 = vadd.f32 %v595, %v708
    %v719 = vadd.f32 %v600, %v713
    %720 = vrot.lane.b32.xlu0 %v292, 104
    %v721 = vpop.permute.xlu0 %720
    %722 = vrot.lane.b32.xlu0 %v340, 104
    %v723 = vpop.permute.xlu0 %722
    %724 = vrot.lane.b32.xlu0 %v342, 104
    %v725 = vpop.permute.xlu0 %724
    %726 = vrot.lane.b32.xlu0 %v344, 104
    %v727 = vpop.permute.xlu0 %726
    %v729 = vsel %vm392, %v380, 0
    %v732 = vsel %vm392, %v381, 0
    %v735 = vsel %vm392, %v382, 0
    %v738 = vsel %vm392, %v383, 0
    %v740 = vsel %vm392, %v721, 0
    %v742 = vsel %vm392, %v723, 0
    %v744 = vsel %vm392, %v725, 0
    %v746 = vsel %vm392, %v727, 0
    %748 = vmatprep.subr.mxu0 0.0
    %749 = vmatpush1.xpose.msra.mxu0 %v740
    %750 = vmatprep.subr.mxu0 0.0
    %751 = vmatpush1.xpose.msra.mxu0 %v742
    %752 = vmatprep.subr.mxu0 0.0
    %753 = vmatpush1.xpose.msra.mxu0 %v744
    %754 = vmatprep.subr.mxu0 0.0
    %755 = vmatpush1.xpose.msra.mxu0 %v746
    %756 = vmatprep.subr.mxu0 0.0
    %757 = vmatpush1.xpose.msra.mxu0 0.0
    %758 = vmatprep.subr.mxu0 0.0
    %759 = vmatpush1.xpose.msra.mxu0 0.0
    %760 = vmatprep.subr.mxu0 0.0
    %761 = vmatpush1.xpose.msra.mxu0 0.0
    %762 = vmatprep.subr.mxu0 0.0
    %763 = vmatpush1.xpose.msra.mxu0 0.0
    %764 = vmatprep.subr.mxu0 0.0
    %765 = vmatpush1.xpose.msra.mxu0 0.0
    %766 = vmatprep.subr.mxu0 0.0
    %767 = vmatpush1.xpose.msra.mxu0 0.0
    %768 = vmatprep.subr.mxu0 0.0
    %769 = vmatpush1.xpose.msra.mxu0 0.0
    %770 = vmatprep.subr.mxu0 0.0
    %771 = vmatpush1.xpose.msra.mxu0 0.0
    %772 = vmatprep.subr.mxu0 0.0
    %773 = vmatpush1.xpose.msra.mxu0 0.0
    %774 = vmatprep.subr.mxu0 0.0
    %775 = vmatpush1.xpose.msra.mxu0 0.0
    %776 = vmatprep.subr.mxu0 0.0
    %777 = vmatpush1.xpose.msra.mxu0 0.0
    %778 = vmatprep.subr.mxu0 0.0
    %779 = vmatpush1.xpose.msra.mxu0 0.0
    %780 = vmatprep.subr.mxu0 0.0
    %781 = vmatpush1.xpose.msra.mxu0 0.0
    %782 = vmatprep.subr.mxu0 0.0
    %783 = vmatpush1.xpose.msra.mxu0 0.0
    %784 = vmatprep.subr.mxu0 0.0
    %785 = vmatpush1.xpose.msra.mxu0 0.0
    %786 = vmatprep.subr.mxu0 0.0
    %787 = vmatpush1.xpose.msra.mxu0 0.0
    %788 = vmatprep.subr.mxu0 0.0
    %789 = vmatpush1.xpose.msra.mxu0 0.0
    %790 = vmatprep.subr.mxu0 0.0
    %791 = vmatpush1.xpose.msra.mxu0 0.0
    %792 = vmatprep.subr.mxu0 0.0
    %793 = vmatpush1.xpose.msra.mxu0 0.0
    %794 = vmatprep.subr.mxu0 0.0
    %795 = vmatpush1.xpose.msra.mxu0 0.0
    %796 = vmatprep.subr.mxu0 0.0
    %797 = vmatpush1.xpose.msra.mxu0 0.0
    %798 = vmatprep.subr.mxu0 0.0
    %799 = vmatpush1.xpose.msra.mxu0 0.0
    %800 = vmatprep.subr.mxu0 0.0
    %801 = vmatpush1.xpose.msra.mxu0 0.0
    %802 = vmatprep.subr.mxu0 0.0
    %803 = vmatpush1.xpose.msra.mxu0 0.0
    %804 = vmatprep.subr.mxu0 0.0
    %805 = vmatpush1.xpose.msra.mxu0 0.0
    %806 = vmatprep.subr.mxu0 0.0
    %807 = vmatpush1.xpose.msra.mxu0 0.0
    %808 = vmatprep.subr.mxu0 0.0
    %809 = vmatpush1.xpose.msra.mxu0 0.0
    %810 = vmatprep.subr.mxu0 0.0
    %811 = vmatpush1.xpose.msra.mxu0 0.0
    %812 = vmatprep.mubr.f32.mxu0 0.0
    %813 = vmatmul.mubr.f32.gmra.mrb[0].mxu0 %v729
    %v814 = vpop.f32.mrb[0].mxu0
    %v815 = vadd.f32 0.0, %v814
    %v816 = vpop.f32.mrb[0].mxu0
    %817 = vmatprep.mubr.f32.mxu0 0.0
    %818 = vmatmul.mubr.f32.gmra.mrb[0].mxu0 %v732
    %v819 = vpop.f32.mrb[0].mxu0
    %v820 = vadd.f32 0.0, %v819
    %v821 = vpop.f32.mrb[0].mxu0
    %822 = vmatprep.mubr.f32.mxu0 0.0
    %823 = vmatmul.mubr.f32.gmra.mrb[0].mxu0 %v735
    %v824 = vpop.f32.mrb[0].mxu0
    %v825 = vadd.f32 0.0, %v824
    %v826 = vpop.f32.mrb[0].mxu0
    %827 = vmatprep.mubr.f32.mxu0 0.0
    %828 = vmatmul.mubr.f32.gmra.mrb[0].mxu0 %v738
    %v829 = vpop.f32.mrb[0].mxu0
    %v830 = vadd.f32 0.0, %v829
    %v831 = vpop.f32.mrb[0].mxu0
    %832 = vdwg.mxu0
    %v833 = vadd.f32 %v716, %v815
    %v834 = vadd.f32 %v717, %v820
    %v835 = vadd.f32 %v718, %v825
    %v836 = vadd.f32 %v719, %v830
    %v837 = vmul.f32 %v833, 0.03125
    %v838 = vmul.f32 %v834, 0.03125
    %v839 = vmul.f32 %v835, 0.03125
    %v840 = vmul.f32 %v836, 0.03125
    %v841 = vld [vmem:[#allocation7] sm:$0xff]
    %v842 = vld [vmem:[#allocation7 + $0x8] sm:$0xff]
    %v843 = vld [vmem:[#allocation7 + $0x10] sm:$0xff]
    %v844 = vld [vmem:[#allocation7 + $0x18] sm:$0xff]
    %v845 = vadd.f32 %v837, %v841
    %v846 = vadd.f32 %v838, %v842
    %v847 = vadd.f32 %v839, %v843
    %v848 = vadd.f32 %v840, %v844
    %vm849 = vcmask 261120
    %v850 = vsel %vm849, %v845, -inf
    %851 = vmax.xlane.f32.xlu0 %v850
    %v852 = vpop.xlane.xlu0 %851
    %v853 = vsel %vm849, %v846, -inf
    %854 = vmax.xlane.f32.xlu0 %v853
    %v855 = vpop.xlane.xlu0 %854
    %v856 = vsel %vm849, %v847, -inf
    %857 = vmax.xlane.f32.xlu0 %v856
    %v858 = vpop.xlane.xlu0 %857
    %v859 = vsel %vm849, %v848, -inf
    %860 = vmax.xlane.f32.xlu0 %v859
    %v861 = vpop.xlane.xlu0 %860
    %v862 = vsub.f32 %v845, %v852
    %v863 = vsub.f32 %v846, %v855
    %v864 = vsub.f32 %v847, %v858
    %v865 = vsub.f32 %v848, %v861
    %v866 = vmul.f32 %v862, 1.442695
    %v867 = vpow.pop %v866
    %v868 = vmul.f32 %v863, 1.442695
    %v869 = vpow.pop %v868
    %v870 = vmul.f32 %v864, 1.442695
    %v871 = vpow.pop %v870
    %v872 = vmul.f32 %v865, 1.442695
    %v873 = vpow.pop %v872
    %v874 = vsel %vm849, %v867, 0.0
    %875 = vadd.xlane.f32.xlu0 %v874
    %v876 = vpop.xlane.xlu0 %875
    %v877 = vsel %vm849, %v869, 0.0
    %878 = vadd.xlane.f32.xlu0 %v877
    %v879 = vpop.xlane.xlu0 %878
    %v880 = vsel %vm849, %v871, 0.0
    %881 = vadd.xlane.f32.xlu0 %v880
    %v882 = vpop.xlane.xlu0 %881
    %v883 = vsel %vm849, %v873, 0.0
    %884 = vadd.xlane.f32.xlu0 %v883
    %v885 = vpop.xlane.xlu0 %884
    %v886 = vrcp.pop %v876
    %v887 = vmul.f32 %v867, %v886
    %v888 = vrcp.pop %v879
    %v889 = vmul.f32 %v869, %v888
    %v890 = vrcp.pop %v882
    %v891 = vmul.f32 %v871, %v890
    %v892 = vrcp.pop %v885
    %v893 = vmul.f32 %v873, %v892
    %v895 = vsel %vm849, %v887, 0
    %v898 = vsel %vm849, %v889, 0
    %v901 = vsel %vm849, %v891, 0
    %v904 = vsel %vm849, %v893, 0
    %v906 = vsel %vm849, %v333, 0
    %v908 = vsel %vm849, %v347, 0
    %v910 = vsel %vm849, %v349, 0
    %v912 = vsel %vm849, %v351, 0
    %914 = vmatprep.subr.mxu0 0.0
    %915 = vmatpush1.xpose.msra.mxu0 %v906
    %916 = vmatprep.subr.mxu0 0.0
    %917 = vmatpush1.xpose.msra.mxu0 %v908
    %918 = vmatprep.subr.mxu0 0.0
    %919 = vmatpush1.xpose.msra.mxu0 %v910
    %920 = vmatprep.subr.mxu0 0.0
    %921 = vmatpush1.xpose.msra.mxu0 %v912
    %922 = vmatprep.subr.mxu0 0.0
    %923 = vmatpush1.xpose.msra.mxu0 0.0
    %924 = vmatprep.subr.mxu0 0.0
    %925 = vmatpush1.xpose.msra.mxu0 0.0
    %926 = vmatprep.subr.mxu0 0.0
    %927 = vmatpush1.xpose.msra.mxu0 0.0
    %928 = vmatprep.subr.mxu0 0.0
    %929 = vmatpush1.xpose.msra.mxu0 0.0
    %930 = vmatprep.subr.mxu0 0.0
    %931 = vmatpush1.xpose.msra.mxu0 0.0
    %932 = vmatprep.subr.mxu0 0.0
    %933 = vmatpush1.xpose.msra.mxu0 0.0
    %934 = vmatprep.subr.mxu0 0.0
    %935 = vmatpush1.xpose.msra.mxu0 0.0
    %936 = vmatprep.subr.mxu0 0.0
    %937 = vmatpush1.xpose.msra.mxu0 0.0
    %938 = vmatprep.subr.mxu0 0.0
    %939 = vmatpush1.xpose.msra.mxu0 0.0
    %940 = vmatprep.subr.mxu0 0.0
    %941 = vmatpush1.xpose.msra.mxu0 0.0
    %942 = vmatprep.subr.mxu0 0.0
    %943 = vmatpush1.xpose.msra.mxu0 0.0
    %944 = vmatprep.subr.mxu0 0.0
    %945 = vmatpush1.xpose.msra.mxu0 0.0
    %946 = vmatprep.subr.mxu0 0.0
    %947 = vmatpush1.xpose.msra.mxu0 0.0
    %948 = vmatprep.subr.mxu0 0.0
    %949 = vmatpush1.xpose.msra.mxu0 0.0
    %950 = vmatprep.subr.mxu0 0.0
    %951 = vmatpush1.xpose.msra.mxu0 0.0
    %952 = vmatprep.subr.mxu0 0.0
    %953 = vmatpush1.xpose.msra.mxu0 0.0
    %954 = vmatprep.subr.mxu0 0.0
    %955 = vmatpush1.xpose.msra.mxu0 0.0
    %956 = vmatprep.subr.mxu0 0.0
    %957 = vmatpush1.xpose.msra.mxu0 0.0
    %958 = vmatprep.subr.mxu0 0.0
    %959 = vmatpush1.xpose.msra.mxu0 0.0
    %960 = vmatprep.subr.mxu0 0.0
    %961 = vmatpush1.xpose.msra.mxu0 0.0
    %962 = vmatprep.subr.mxu0 0.0
    %963 = vmatpush1.xpose.msra.mxu0 0.0
    %964 = vmatprep.subr.mxu0 0.0
    %965 = vmatpush1.xpose.msra.mxu0 0.0
    %966 = vmatprep.subr.mxu0 0.0
    %967 = vmatpush1.xpose.msra.mxu0 0.0
    %968 = vmatprep.subr.mxu0 0.0
    %969 = vmatpush1.xpose.msra.mxu0 0.0
    %970 = vmatprep.subr.mxu0 0.0
    %971 = vmatpush1.xpose.msra.mxu0 0.0
    %972 = vmatprep.subr.mxu0 0.0
    %973 = vmatpush1.xpose.msra.mxu0 0.0
    %974 = vmatprep.subr.mxu0 0.0
    %975 = vmatpush1.xpose.msra.mxu0 0.0
    %976 = vmatprep.subr.mxu0 0.0
    %977 = vmatpush1.xpose.msra.mxu0 0.0
    %978 = vmatprep.mubr.f32.mxu0 0.0
    %979 = vmatmul.mubr.f32.gmra.mrb[0].mxu0 %v895
    %v980 = vpop.f32.mrb[0].mxu0
    %v981 = vadd.f32 0.0, %v980
    %v982 = vpop.f32.mrb[0].mxu0
    %983 = vmatprep.mubr.f32.mxu0 0.0
    %984 = vmatmul.mubr.f32.gmra.mrb[0].mxu0 %v898
    %v985 = vpop.f32.mrb[0].mxu0
    %v986 = vadd.f32 0.0, %v985
    %v987 = vpop.f32.mrb[0].mxu0
    %988 = vmatprep.mubr.f32.mxu0 0.0
    %989 = vmatmul.mubr.f32.gmra.mrb[0].mxu0 %v901
    %v990 = vpop.f32.mrb[0].mxu0
    %v991 = vadd.f32 0.0, %v990
    %v992 = vpop.f32.mrb[0].mxu0
    %993 = vmatprep.mubr.f32.mxu0 0.0
    %994 = vmatmul.mubr.f32.gmra.mrb[0].mxu0 %v904
    %v995 = vpop.f32.mrb[0].mxu0
    %v996 = vadd.f32 0.0, %v995
    %v997 = vpop.f32.mrb[0].mxu0
    %998 = vdwg.mxu0
    %v999 = vld [vmem:[#allocation8] sm:$0xf]
    %v1000 = vld [vmem:[#allocation8 + $0x4] sm:$0xf]
    %v1001 = vld [vmem:[#allocation8 + $0x8] sm:$0xf]
    %v1002 = vld [vmem:[#allocation8 + $0xc] sm:$0xf]
    %v1003 = vld [vmem:[#allocation8 + $0x10] sm:$0xf]
    %v1004 = vld [vmem:[#allocation8 + $0x14] sm:$0xf]
    %v1005 = vld [vmem:[#allocation8 + $0x18] sm:$0xf]
    %v1006 = vld [vmem:[#allocation8 + $0x1c] sm:$0xf]
    %v1007 = vld [vmem:[#allocation8 + $0x20] sm:$0xf]
    %v1008 = vld [vmem:[#allocation8 + $0x24] sm:$0xf]
    %v1009 = vld [vmem:[#allocation8 + $0x28] sm:$0xf]
    %v1010 = vld [vmem:[#allocation8 + $0x2c] sm:$0xf]
    %v1011 = vld [vmem:[#allocation8 + $0x30] sm:$0xf]
    %v1012 = vld [vmem:[#allocation8 + $0x34] sm:$0xf]
    %v1013 = vld [vmem:[#allocation8 + $0x38] sm:$0xf]
    %v1014 = vld [vmem:[#allocation8 + $0x3c] sm:$0xf]
    %v1015 = vpack.c.bf16 %v981, %v981
    %v1016 = vpack.c.bf16 %v986, %v986
    %v1021 = vunpack.c.l.b16 %v1003
    %v1022 = vunpack.c.l.b16 %v1004
    %v1023 = vunpack.c.l.b16 %v1005
    %v1024 = vunpack.c.l.b16 %v1006
    %v1025 = vpack.c.b16 %v1022, %v1021
    %v1026 = vpack.c.b16 %v1024, %v1023
    %v1030 = vsel %vm849, %v1016, 0
    %1032 = vmatprep.subr.bf16.mxu0 0
    %1033 = vmatpush1.bf16.msra.mxu0 %v1025
    %1034 = vmatprep.subr.bf16.mxu0 0
    %1035 = vmatpush1.bf16.msra.mxu0 %v1026
    %1036 = vmatprep.subr.bf16.mxu0 0
    %1037 = vmatpush1.bf16.msra.mxu0 0
    %1038 = vmatprep.subr.bf16.mxu0 0
    %1039 = vmatpush1.bf16.msra.mxu0 0
    %1040 = vmatprep.subr.bf16.mxu0 0
    %1041 = vmatpush1.bf16.msra.mxu0 0
    %1042 = vmatprep.subr.bf16.mxu0 0
    %1043 = vmatpush1.bf16.msra.mxu0 0
    %1044 = vmatprep.subr.bf16.mxu0 0
    %1045 = vmatpush1.bf16.msra.mxu0 0
    %1046 = vmatprep.subr.bf16.mxu0 0
    %1047 = vmatpush1.bf16.msra.mxu0 0
    %1048 = vmatprep.subr.bf16.mxu0 0
    %1049 = vmatpush1.bf16.msra.mxu0 0
    %1050 = vmatprep.subr.bf16.mxu0 0
    %1051 = vmatpush1.bf16.msra.mxu0 0
    %1052 = vmatprep.subr.bf16.mxu0 0
    %1053 = vmatpush1.bf16.msra.mxu0 0
    %1054 = vmatprep.subr.bf16.mxu0 0
    %1055 = vmatpush1.bf16.msra.mxu0 0
    %1056 = vmatprep.subr.bf16.mxu0 0
    %1057 = vmatpush1.bf16.msra.mxu0 0
    %1058 = vmatprep.subr.bf16.mxu0 0
    %1059 = vmatpush1.bf16.msra.mxu0 0
    %1060 = vmatprep.subr.bf16.mxu0 0
    %1061 = vmatpush1.bf16.msra.mxu0 0
    %1062 = vmatprep.subr.bf16.mxu0 0
    %1063 = vmatpush1.bf16.msra.mxu0 0
    %1064 = vmatprep.mubr.bf16.mxu0 0
    %1065 = vmatmul.mubr.bf16.gmra.mrb[0].mxu0 %v1030
    %v1066 = vpop.f32.mrb[0].mxu0
    %v1067 = vadd.f32 0.0, %v1066
    %v1068 = vpop.f32.mrb[0].mxu0
    %v1069 = vpop.f32.mrb[0].mxu0
    %v1070 = vpop.f32.mrb[0].mxu0
    %1071 = vdwg.mxu0
    %v1076 = vunpack.c.l.b16 %v999
    %v1077 = vunpack.c.l.b16 %v1000
    %v1078 = vunpack.c.l.b16 %v1001
    %v1079 = vunpack.c.l.b16 %v1002
    %v1080 = vpack.c.b16 %v1077, %v1076
    %v1081 = vpack.c.b16 %v1079, %v1078
    %v1085 = vsel %vm849, %v1015, 0
    %1087 = vmatprep.subr.bf16.mxu0 0
    %1088 = vmatpush1.bf16.msra.mxu0 %v1080
    %1089 = vmatprep.subr.bf16.mxu0 0
    %1090 = vmatpush1.bf16.msra.mxu0 %v1081
    %1091 = vmatprep.subr.bf16.mxu0 0
    %1092 = vmatpush1.bf16.msra.mxu0 0
    %1093 = vmatprep.subr.bf16.mxu0 0
    %1094 = vmatpush1.bf16.msra.mxu0 0
    %1095 = vmatprep.subr.bf16.mxu0 0
    %1096 = vmatpush1.bf16.msra.mxu0 0
    %1097 = vmatprep.subr.bf16.mxu0 0
    %1098 = vmatpush1.bf16.msra.mxu0 0
    %1099 = vmatprep.subr.bf16.mxu0 0
    %1100 = vmatpush1.bf16.msra.mxu0 0
    %1101 = vmatprep.subr.bf16.mxu0 0
    %1102 = vmatpush1.bf16.msra.mxu0 0
    %1103 = vmatprep.subr.bf16.mxu0 0
    %1104 = vmatpush1.bf16.msra.mxu0 0
    %1105 = vmatprep.subr.bf16.mxu0 0
    %1106 = vmatpush1.bf16.msra.mxu0 0
    %1107 = vmatprep.subr.bf16.mxu0 0
    %1108 = vmatpush1.bf16.msra.mxu0 0
    %1109 = vmatprep.subr.bf16.mxu0 0
    %1110 = vmatpush1.bf16.msra.mxu0 0
    %1111 = vmatprep.subr.bf16.mxu0 0
    %1112 = vmatpush1.bf16.msra.mxu0 0
    %1113 = vmatprep.subr.bf16.mxu0 0
    %1114 = vmatpush1.bf16.msra.mxu0 0
    %1115 = vmatprep.subr.bf16.mxu0 0
    %1116 = vmatpush1.bf16.msra.mxu0 0
    %1117 = vmatprep.subr.bf16.mxu0 0
    %1118 = vmatpush1.bf16.msra.mxu0 0
    %1119 = vmatprep.mubr.bf16.mxu0 0
    %1120 = vmatmul.mubr.bf16.gmra.mrb[0].mxu0 %v1085
    %v1121 = vpop.f32.mrb[0].mxu0
    %v1122 = vadd.f32 %v1067, %v1121
    %v1123 = vpop.f32.mrb[0].mxu0
    %v1124 = vpop.f32.mrb[0].mxu0
    %v1125 = vpop.f32.mrb[0].mxu0
    %1126 = vdwg.mxu0
    %v1127 = vpack.c.bf16 %v991, %v991
    %v1132 = vunpack.c.l.b16 %v1007
    %v1133 = vunpack.c.l.b16 %v1008
    %v1134 = vunpack.c.l.b16 %v1009
    %v1135 = vunpack.c.l.b16 %v1010
    %v1136 = vpack.c.b16 %v1133, %v1132
    %v1137 = vpack.c.b16 %v1135, %v1134
    %v1141 = vsel %vm849, %v1127, 0
    %1143 = vmatprep.subr.bf16.mxu0 0
    %1144 = vmatpush1.bf16.msra.mxu0 %v1136
    %1145 = vmatprep.subr.bf16.mxu0 0
    %1146 = vmatpush1.bf16.msra.mxu0 %v1137
    %1147 = vmatprep.subr.bf16.mxu0 0
    %1148 = vmatpush1.bf16.msra.mxu0 0
    %1149 = vmatprep.subr.bf16.mxu0 0
    %1150 = vmatpush1.bf16.msra.mxu0 0
    %1151 = vmatprep.subr.bf16.mxu0 0
    %1152 = vmatpush1.bf16.msra.mxu0 0
    %1153 = vmatprep.subr.bf16.mxu0 0
    %1154 = vmatpush1.bf16.msra.mxu0 0
    %1155 = vmatprep.subr.bf16.mxu0 0
    %1156 = vmatpush1.bf16.msra.mxu0 0
    %1157 = vmatprep.subr.bf16.mxu0 0
    %1158 = vmatpush1.bf16.msra.mxu0 0
    %1159 = vmatprep.subr.bf16.mxu0 0
    %1160 = vmatpush1.bf16.msra.mxu0 0
    %1161 = vmatprep.subr.bf16.mxu0 0
    %1162 = vmatpush1.bf16.msra.mxu0 0
    %1163 = vmatprep.subr.bf16.mxu0 0
    %1164 = vmatpush1.bf16.msra.mxu0 0
    %1165 = vmatprep.subr.bf16.mxu0 0
    %1166 = vmatpush1.bf16.msra.mxu0 0
    %1167 = vmatprep.subr.bf16.mxu0 0
    %1168 = vmatpush1.bf16.msra.mxu0 0
    %1169 = vmatprep.subr.bf16.mxu0 0
    %1170 = vmatpush1.bf16.msra.mxu0 0
    %1171 = vmatprep.subr.bf16.mxu0 0
    %1172 = vmatpush1.bf16.msra.mxu0 0
    %1173 = vmatprep.subr.bf16.mxu0 0
    %1174 = vmatpush1.bf16.msra.mxu0 0
    %1175 = vmatprep.mubr.bf16.mxu0 0
    %1176 = vmatmul.mubr.bf16.gmra.mrb[0].mxu0 %v1141
    %v1177 = vpop.f32.mrb[0].mxu0
    %v1178 = vadd.f32 0.0, %v1177
    %v1179 = vpop.f32.mrb[0].mxu0
    %v1180 = vpop.f32.mrb[0].mxu0
    %v1181 = vpop.f32.mrb[0].mxu0
    %1182 = vdwg.mxu0
    %v1183 = vadd.f32 %v1122, %v1178
    %v1184 = vpack.c.bf16 %v996, %v996
    %v1189 = vunpack.c.l.b16 %v1011
    %v1190 = vunpack.c.l.b16 %v1012
    %v1191 = vunpack.c.l.b16 %v1013
    %v1192 = vunpack.c.l.b16 %v1014
    %v1193 = vpack.c.b16 %v1190, %v1189
    %v1194 = vpack.c.b16 %v1192, %v1191
    %v1198 = vsel %vm849, %v1184, 0
    %1200 = vmatprep.subr.bf16.mxu0 0
    %1201 = vmatpush1.bf16.msra.mxu0 %v1193
    %1202 = vmatprep.subr.bf16.mxu0 0
    %1203 = vmatpush1.bf16.msra.mxu0 %v1194
    %1204 = vmatprep.subr.bf16.mxu0 0
    %1205 = vmatpush1.bf16.msra.mxu0 0
    %1206 = vmatprep.subr.bf16.mxu0 0
    %1207 = vmatpush1.bf16.msra.mxu0 0
    %1208 = vmatprep.subr.bf16.mxu0 0
    %1209 = vmatpush1.bf16.msra.mxu0 0
    %1210 = vmatprep.subr.bf16.mxu0 0
    %1211 = vmatpush1.bf16.msra.mxu0 0
    %1212 = vmatprep.subr.bf16.mxu0 0
    %1213 = vmatpush1.bf16.msra.mxu0 0
    %1214 = vmatprep.subr.bf16.mxu0 0
    %1215 = vmatpush1.bf16.msra.mxu0 0
    %1216 = vmatprep.subr.bf16.mxu0 0
    %1217 = vmatpush1.bf16.msra.mxu0 0
    %1218 = vmatprep.subr.bf16.mxu0 0
    %1219 = vmatpush1.bf16.msra.mxu0 0
    %1220 = vmatprep.subr.bf16.mxu0 0
    %1221 = vmatpush1.bf16.msra.mxu0 0
    %1222 = vmatprep.subr.bf16.mxu0 0
    %1223 = vmatpush1.bf16.msra.mxu0 0
    %1224 = vmatprep.subr.bf16.mxu0 0
    %1225 = vmatpush1.bf16.msra.mxu0 0
    %1226 = vmatprep.subr.bf16.mxu0 0
    %1227 = vmatpush1.bf16.msra.mxu0 0
    %1228 = vmatprep.subr.bf16.mxu0 0
    %1229 = vmatpush1.bf16.msra.mxu0 0
    %1230 = vmatprep.subr.bf16.mxu0 0
    %1231 = vmatpush1.bf16.msra.mxu0 0
    %1232 = vmatprep.mubr.bf16.mxu0 0
    %1233 = vmatmul.mubr.bf16.gmra.mrb[0].mxu0 %v1198
    %v1234 = vpop.f32.mrb[0].mxu0
    %v1235 = vadd.f32 0.0, %v1234
    %v1236 = vpop.f32.mrb[0].mxu0
    %v1237 = vpop.f32.mrb[0].mxu0
    %v1238 = vpop.f32.mrb[0].mxu0
    %1239 = vdwg.mxu0
    %v1240 = vadd.f32 %v1183, %v1235
    %v1241 = vld [vmem:[%s5] sm:$0x1]
    %v1243 = vlaneseq
    %v1244 = vshrl.u32 %v1243, 7
    %v1245 = vsub.s32 0, %v1244
    %v1246 = vrot.slane %v1241, %v1245
    %v1248 = vadd.f32 %v1240, %v1246
    %1249 = vst [vmem:[#allocation10] sm:$0xff] %v1248
    // Predicated region
    $region42: #{mha_forward.1} parent=1 // pred_check
      _
    $region43: #{mha_forward.1} parent=1 // pred_check_branch
      %1251 = sbr.rel (0) target = $region45
    $region44: #{mha_forward.1} parent=1 // pred_region
      %s1253 = ssub.s32 128, 128
      %1254 = vsyncadd [#allocation4], %s1253
      %s1256 = sshll.u32 [#allocation10], 4
      %s1257 = int_to_ptr.vmem [resolvable:$true] %s1256
      %1259 = dma.vmem_to_hbm [thread:$0]  %s1257, 128, %s6, [#allocation4]
    $region45: #{mha_forward.1} parent=1 // pred_fallthru
      _
    // Predicated region
    $region46: #{mha_forward.1} parent=1 // pred_check
      _
    $region47: #{mha_forward.1} parent=1 // pred_check_branch
      %1261 = sbr.rel (0) target = $region49
    $region48: #{mha_forward.1} parent=1 // pred_region
      %1262 = dma.done [#allocation4], 128
    $region49: #{mha_forward.1} parent=1 // pred_fallthru
      _
    %1263 = vsyncpa [#allocation3], 1
    %1264 = vsyncpa [#allocation6], 1
    %1265 = vsyncpa [#allocation9], 1
    %1266 = vsyncpa [#allocation4], 1

</llo_original>
